<compile_context>
chip_gen: v6e
topology: v6e:2x2x1
jax: 0.10.0
libtpu: 0.0.40
codegen_flags: <defaults>
</compile_context>

<pallas_src>
import functools
import math

import jax
import jax.numpy as jnp
from jax.experimental import pallas as pl
from jax.experimental.pallas import tpu as pltpu


def _smoothing_constants(size, smoothing):
    """confidence, smooth_val and sum_c p_c*log(p_c) of the smoothed target dist."""
    confidence = 1.0 - smoothing
    smooth_val = smoothing / (size - 1)
    const = 0.0
    if confidence > 0.0:
        const += confidence * math.log(confidence)
    if smooth_val > 0.0:
        const += (size - 1) * smooth_val * math.log(smooth_val)
    return confidence, smooth_val, const


def _ls_kl_kernel(nvt_ref, x_ref, tgt_ref, loss_ref, *,
                  size, padding_idx, smoothing, use_bf16_exp):
    """One (batch row, seq chunk, seq tile) grid step.

    nvt_ref:  (B,)        int32 number of valid sequence tiles per utterance (SMEM)
    x_ref:    (1, tT, C)  logits (native dtype, cast to f32 in-kernel)
    tgt_ref:  (1, tT, 1)  int32 targets (padding_idx marks ignored tokens)
    loss_ref: (1, 1, 1)   f32 partial-loss accumulator (resident across seq tiles)
    """
    b = pl.program_id(0)
    c = pl.program_id(1)
    t = pl.program_id(2)
    n_inner = pl.num_programs(2)

    @pl.when(t == 0)
    def _():
        loss_ref[...] = jnp.zeros_like(loss_ref)

    seq_tile = c * n_inner + t

    # Skip tiles that lie entirely past the last valid token (their DMA was already
    # deduplicated by the clamped index_map).
    @pl.when(seq_tile < nvt_ref[b])
    def _():
        confidence, smooth_val, const = _smoothing_constants(size, smoothing)

        x = x_ref[...].astype(jnp.float32)              # (1, tT, C)
        tgt = tgt_ref[...]                              # (1, tT, 1)
        ignore = tgt == padding_idx
        tgt_safe = jnp.where(ignore, 0, tgt)

        # Lane-only class-id iota; broadcast happens in the compare.
        col = jax.lax.broadcasted_iota(jnp.int32, (1, 1, size), 2)

        # log-sum-exp (no full (tT, C) log-prob tensor is materialized).
        m = jnp.max(x, axis=-1, keepdims=True)          # (1,tT,1)
        xm = x - m
        if use_bf16_exp:
            e = jnp.exp(xm.astype(jnp.bfloat16)).astype(jnp.float32)
        else:
            e = jnp.exp(xm)
        lse = m + jnp.log(jnp.sum(e, axis=-1, keepdims=True))   # (1,tT,1)

        # Fused weighted class reduce:
        #   sum_c p_c*(log p_c - logq_c) = const + lse - sum_c w_c * x_c
        # with w_c = confidence at the target class, smooth_val elsewhere
        # (because size*smooth_val + confidence - smooth_val == 1).
        w = jnp.where(col == tgt_safe,
                      jnp.float32(confidence), jnp.float32(smooth_val))
        weighted = jnp.sum(w * x, axis=-1, keepdims=True)        # (1,tT,1)

        tok = const + lse - weighted
        tok = jnp.where(ignore, 0.0, tok)               # mask AFTER the class reduce
        loss_ref[...] += jnp.sum(tok)


def _vmem_limit_bytes():
    """Scoped-VMEM limit sized to the chip, with real headroom on v7x (64 MiB)."""
    try:
        cap = int(pltpu.get_tpu_info().vmem_capacity_bytes)
    except Exception:
        cap = 64 << 20                                   # conservative fallback
    if cap <= (64 << 20):                                # v7x-class part
        return min(40 << 20, (cap * 3) // 4)
    return min((cap * 3) // 4, 96 << 20)                 # v5e/v6e (128 MiB)


def _bf16_eup_ok():
    """bf16 EUP (exp) path exists on v6e/v7x, not on v5e."""
    try:
        kind = jax.devices()[0].device_kind.lower()
    except Exception:
        return False
    return ("v6" in kind) or ("v7" in kind) or ("7x" in kind)


def _choose_t_tile(T, C, itemsize, budget_bytes):
    """Largest sequence tile that fits the budget (prefers a divisor of T).

    Returns a tile that is either T itself or a multiple of the sublane granule;
    if no granule-multiple divisor of T exists, the wrapper pads T.
    """
    granule = max(8, 32 // max(int(itemsize), 1))        # 8 f32 / 16 bf16 / 32 int8
    # Per-row VMEM: double-buffered native-dtype block + ~3 f32-sized intermediates.
    per_row = C * (2 * itemsize + 14)
    max_rows = max(granule, min(1024, int(budget_bytes) // per_row))
    if T <= max_rows:
        return T                                         # whole sequence in one block
    t = (max_rows // granule) * granule
    best = max(t, granule)
    while t >= granule:                                  # prefer a divisor of T
        if T % t == 0:
            return t
        t -= granule
    return best                                          # wrapper pads T


def per_sample_label_smoothing_loss(x, target, *, size, padding_idx, smoothing,
                                    t_tile=None):
    """Per-utterance label-smoothed KL loss (sum over tokens & classes)."""
    B, T, C = x.shape
    assert C == size, (C, size)
    itemsize = jnp.dtype(x.dtype).itemsize
    vmem_limit = _vmem_limit_bytes()
    if t_tile is None:
        t_tile = _choose_t_tile(T, C, itemsize, vmem_limit // 3)

    tgt = target.astype(jnp.int32)
    if T % t_tile != 0:
        # Pad the sequence so the tile divides it; padded tokens are masked.
        T_pad = pl.cdiv(T, t_tile) * t_tile
        x = jnp.pad(x, ((0, 0), (0, T_pad - T), (0, 0)))
        tgt = jnp.pad(tgt, ((0, 0), (0, T_pad - T)), constant_values=padding_idx)
        T = T_pad

    n_t = T // t_tile
    # Outer parallel chunk axis -> megacore balance on v7x for small/odd batches.
    n_chunks = 2 if (n_t % 2 == 0 and n_t >= 2) else 1
    n_inner = n_t // n_chunks

    # Valid length = last non-pad position + 1 (robust to non-tail padding), then
    # converted to valid-tile counts for the scalar-prefetch skip/dedup.
    pos1 = jnp.arange(1, T + 1, dtype=jnp.int32)[None, :]
    valid_len = jnp.max(jnp.where(tgt != padding_idx, pos1, 0), axis=1)
    nvt = ((valid_len + t_tile - 1) // t_tile).astype(jnp.int32)   # (B,)

    tgt3 = tgt[..., None]                                # (B, T, 1)
    use_bf16_exp = _bf16_eup_ok() and (x.dtype == jnp.bfloat16)
    # TODO(synk): on v7x the bf16-exp path also pays off for f32 logits; kept off
    # here to preserve tight f32 numerics.

    def stream_map(bi, ci, ti, nvt_ref):
        # Clamp so tiles past the valid length reuse the previous resident block
        # (Pallas dedups the DMA).
        last = jnp.maximum(nvt_ref[bi] - 1, 0)
        return (bi, jnp.minimum(ci * n_inner + ti, last), 0)

    cost = pl.CostEstimate(
        flops=8 * B * T * C,
        transcendentals=B * T * C + B * T,
        bytes_accessed=B * T * C * itemsize + B * T * 4 + B * n_chunks * 4 + B * 4,
    )

    out = pl.pallas_call(
        functools.partial(_ls_kl_kernel, size=size, padding_idx=padding_idx,
                          smoothing=smoothing, use_bf16_exp=use_bf16_exp),
        out_shape=jax.ShapeDtypeStruct((B, n_chunks, 1), jnp.float32),
        grid_spec=pltpu.PrefetchScalarGridSpec(
            num_scalar_prefetch=1,
            grid=(B, n_chunks, n_inner),                 # reduction (seq) axis last
            in_specs=[
                pl.BlockSpec((1, t_tile, C), stream_map),
                pl.BlockSpec((1, t_tile, 1), stream_map),
            ],
            out_specs=pl.BlockSpec((1, 1, 1),
                                   lambda bi, ci, ti, nvt_ref: (bi, ci, 0)),
        ),
        compiler_params=pltpu.CompilerParams(
            dimension_semantics=("parallel", "parallel", "arbitrary"),
            vmem_limit_bytes=vmem_limit),
        cost_estimate=cost,
    )(nvt, x, tgt3)                                      # logits stream in native dtype
    return jnp.sum(out[:, :, 0], axis=1)                 # (B,)


def dro_label_smoothing_forward(x, target, group_ids, dro_q, *,
                                size, padding_idx, smoothing,
                                dro_group_count, dro_step_size, dro_q_epsilon):
    """Forward pass of DROLabelSmoothingLoss.

    x:         (B, T, C) logits
    target:    (B, T)    int targets, padding_idx = ignored
    group_ids: (B,)      int group index per utterance (the utt2category mapping)
    dro_q:     (G,)      current DRO group weights (module state, passed explicitly)

    Returns (scalar_loss, dro_losses (B,), new_dro_q (G,), per_utt_losses (B,)).
    """
    B = x.shape[0]
    G = dro_group_count

    # --- Pallas hot path: per-utterance label-smoothed KL loss -------------
    losses = per_sample_label_smoothing_loss(
        x, target, size=size, padding_idx=padding_idx, smoothing=smoothing)

    # --- DRO bookkeeping (tiny vectors, plain JAX) --------------------------
    input_lengths = jnp.sum(target != padding_idx, axis=1).astype(jnp.float32)
    per_len = losses / jnp.maximum(input_lengths, 1.0)

    group_sum = jnp.zeros((G,), jnp.float32).at[group_ids].add(per_len)
    group_cnt = jnp.zeros((G,), jnp.float32).at[group_ids].add(1.0)
    present = group_cnt > 0
    group_mean = group_sum / jnp.maximum(group_cnt, 1.0)

    # TODO(synk): `use_running_mean` / `running_mean_window` are referenced but never
    # defined in __init__; implement the plain (non-running-mean) q update only.
    q = dro_q * jnp.where(present, jnp.exp(group_mean * dro_step_size), 1.0)
    q = q + dro_q_epsilon
    q = q / q.sum()

    dro_losses = losses * q[group_ids] * G

    # TODO(synk): the reference forward() has no explicit return statement; expose the
    # batch-normalized sum of DRO-reweighted losses as the scalar value.
    loss = dro_losses.sum() / B
    return loss, dro_losses, q, losses


def _reference_per_sample(x, target, *, size, padding_idx, smoothing):
    """Pure-JAX reference of the per-utterance label-smoothed KL loss."""
    confidence = 1.0 - smoothing
    smooth_val = smoothing / (size - 1)
    logp = jax.nn.log_softmax(x.astype(jnp.float32), axis=-1)
    ignore = target == padding_idx
    tgt_safe = jnp.where(ignore, 0, target)
    true_dist = jnp.full(x.shape, smooth_val, jnp.float32)
    true_dist = jnp.where(
        jax.nn.one_hot(tgt_safe, size, dtype=jnp.bool_), confidence, true_dist)
    kl = true_dist * (jnp.log(true_dist) - logp)
    kl = jnp.where(ignore[..., None], 0.0, kl)
    return kl.sum(axis=(1, 2))


if __name__ == "__main__":
    # Module hyperparameters (deterministic, in-script).
    SIZE = 256          # number of classes
    PADDING_IDX = 0
    SMOOTHING = 0.1
    DRO_GROUP_COUNT = 2
    DRO_STEP_SIZE = 0.01
    DRO_Q_EPSILON = 1e-10

    B, T = 4, 16
    key = jax.random.PRNGKey(0)
    kx, kt, k2x, k2t = jax.random.split(key, 4)

    x = jax.random.normal(kx, (B, T, SIZE), dtype=jnp.float32)
    target = jax.random.randint(kt, (B, T), 1, SIZE, dtype=jnp.int32)
    # Mask a deterministic tail of each utterance with padding_idx.
    pad_mask = jnp.arange(T)[None, :] >= jnp.array([16, 12, 10, 14])[:, None]
    target = jnp.where(pad_mask, PADDING_IDX, target)

    # Synthetic utt2category / group_id_to_ix mapping.
    group_ids = jnp.array([0, 1, 0, 1], dtype=jnp.int32)
    dro_q = jnp.ones((DRO_GROUP_COUNT,), jnp.float32) / DRO_GROUP_COUNT

    loss, dro_losses, new_q, per_utt = jax.block_until_ready(
        dro_label_smoothing_forward(
            x, target, group_ids, dro_q,
            size=SIZE, padding_idx=PADDING_IDX, smoothing=SMOOTHING,
            dro_group_count=DRO_GROUP_COUNT, dro_step_size=DRO_STEP_SIZE,
            dro_q_epsilon=DRO_Q_EPSILON))

    ref = _reference_per_sample(
        x, target, size=SIZE, padding_idx=PADDING_IDX, smoothing=SMOOTHING)
    assert jnp.allclose(per_utt, ref, rtol=1e-4, atol=1e-2), (per_utt, ref)
    assert jnp.isfinite(loss) and jnp.all(jnp.isfinite(new_q))

    # bf16 logits path (no wrapper up-cast; kernel computes in f32 internally, with
    # the exp on the bf16 EUP where available).
    x_bf16 = x.astype(jnp.bfloat16)
    per_utt_bf16 = jax.block_until_ready(
        per_sample_label_smoothing_loss(
            x_bf16, target, size=SIZE, padding_idx=PADDING_IDX,
            smoothing=SMOOTHING))
    ref_bf16 = _reference_per_sample(
        x_bf16, target, size=SIZE, padding_idx=PADDING_IDX, smoothing=SMOOTHING)
    assert jnp.allclose(per_utt_bf16, ref_bf16, rtol=3e-3, atol=5e-2), (
        per_utt_bf16, ref_bf16)

    # Multi-tile path: exercises the chunked grid, per-tile accumulation, the
    # scalar-prefetch clamp/skip of fully-padded tiles, and T-padding (44 -> 48).
    B2, T2 = 3, 44
    x2 = jax.random.normal(k2x, (B2, T2, SIZE), dtype=jnp.float32)
    target2 = jax.random.randint(k2t, (B2, T2), 1, SIZE, dtype=jnp.int32)
    pad_mask2 = jnp.arange(T2)[None, :] >= jnp.array([44, 20, 9])[:, None]
    target2 = jnp.where(pad_mask2, PADDING_IDX, target2)
    per_utt2 = jax.block_until_ready(
        per_sample_label_smoothing_loss(
            x2, target2, size=SIZE, padding_idx=PADDING_IDX,
            smoothing=SMOOTHING, t_tile=8))
    ref2 = _reference_per_sample(
        x2, target2, size=SIZE, padding_idx=PADDING_IDX, smoothing=SMOOTHING)
    assert jnp.allclose(per_utt2, ref2, rtol=1e-4, atol=1e-2), (per_utt2, ref2)

    print("KERNEL_OK")
</pallas_src>

<mosaic_0001>
module attributes {stable_mosaic.version = 11 : i64} {
  func.func @_ls_kl_kernel(%arg0: i32, %arg1: i32, %arg2: i32, %arg3: memref<4xi32, #tpu.memory_space<smem>>, %arg4: memref<1x16x256xf32, #tpu.memory_space<vmem>>, %arg5: memref<1x16x1xi32, #tpu.memory_space<vmem>>, %arg6: memref<1x1x1xf32, #tpu.memory_space<vmem>>) attributes {dimension_semantics = [#tpu.dimension_semantics<parallel>, #tpu.dimension_semantics<parallel>, #tpu.dimension_semantics<arbitrary>], iteration_bounds = array<i64: 4, 1, 1>, scalar_prefetch = 1 : i64, scratch_operands = 0 : i64, tpu.core_type = #tpu.core_type<tc>, window_params = [{transform_indices = @transform_0, window_bounds = array<i64: 1, 16, 256>}, {transform_indices = @transform_1, window_bounds = array<i64: 1, 16, 1>}, {transform_indices = @transform_2, window_bounds = array<i64: 1, 1, 1>}]} {
    %c0_i32 = arith.constant 0 : i32
    %0 = arith.cmpi eq, %arg2, %c0_i32 : i32
    %1 = arith.extui %0 : i1 to i32
    %c0_i32_0 = arith.constant 0 : i32
    %2 = arith.cmpi ne, %1, %c0_i32_0 : i32
    scf.if %2 {
      %cst = arith.constant 0.000000e+00 : f32
      %10 = vector.broadcast %cst : f32 to vector<1x1x1xf32>
      %c0 = arith.constant 0 : index
      %c0_2 = arith.constant 0 : index
      %c0_3 = arith.constant 0 : index
      %11 = vector.load %arg6[%c0, %c0_2, %c0_3] : memref<1x1x1xf32, #tpu.memory_space<vmem>>, vector<1x1x1xf32>
      tpu.vector_store %arg6[%c0, %c0_2, %c0_3], %10 {strides = array<i32>} : memref<1x1x1xf32, #tpu.memory_space<vmem>>, vector<1x1x1xf32>,
    } else {
    }
    %c1_i32 = arith.constant 1 : i32
    %3 = arith.muli %arg1, %c1_i32 : i32
    %4 = arith.addi %3, %arg2 : i32
    %5 = arith.index_cast %arg0 : i32 to index
    %6 = memref.load %arg3[%5] : memref<4xi32, #tpu.memory_space<smem>>
    %7 = arith.cmpi slt, %4, %6 : i32
    %8 = arith.extui %7 : i1 to i32
    %c0_i32_1 = arith.constant 0 : i32
    %9 = arith.cmpi ne, %8, %c0_i32_1 : i32
    scf.if %9 {
      %c0 = arith.constant 0 : index
      %c0_2 = arith.constant 0 : index
      %c0_3 = arith.constant 0 : index
      %10 = vector.load %arg4[%c0, %c0_2, %c0_3] : memref<1x16x256xf32, #tpu.memory_space<vmem>>, vector<1x16x256xf32>
      %c0_4 = arith.constant 0 : index
      %c0_5 = arith.constant 0 : index
      %c0_6 = arith.constant 0 : index
      %11 = vector.load %arg5[%c0_4, %c0_5, %c0_6] : memref<1x16x1xi32, #tpu.memory_space<vmem>>, vector<1x16x1xi32>
      %c0_i32_7 = arith.constant 0 : i32
      %12 = vector.broadcast %c0_i32_7 : i32 to vector<1x16x1xi32>
      %13 = arith.cmpi eq, %11, %12 : vector<1x16x1xi32>
      %c0_i32_8 = arith.constant 0 : i32
      %14 = vector.broadcast %c0_i32_8 : i32 to vector<1x16x1xi32>
      %15 = arith.select %13, %14, %11 : vector<1x16x1xi1>, vector<1x16x1xi32>
      %16 = tpu.iota {dimensions = array<i32: 2>} : vector<1x1x256xi32>
      %cst = arith.constant dense<0xFF800000> : vector<1x16xf32>
      %17 = vector.multi_reduction <maximumf>, %10, %cst [2] : vector<1x16x256xf32> to vector<1x16xf32>
      %18 = vector.shape_cast %17 : vector<1x16xf32> to vector<1x16x1xf32>
      %19 = vector.broadcast %18 : vector<1x16x1xf32> to vector<1x16x256xf32>
      %20 = arith.subf %10, %19 : vector<1x16x256xf32>
      %21 = math.exp %20 : vector<1x16x256xf32>
      %cst_9 = arith.constant dense<0.000000e+00> : vector<1x16xf32>
      %22 = vector.multi_reduction <add>, %21, %cst_9 [2] : vector<1x16x256xf32> to vector<1x16xf32>
      %23 = vector.shape_cast %22 : vector<1x16xf32> to vector<1x16x1xf32>
      %24 = math.log %23 : vector<1x16x1xf32>
      %25 = arith.addf %18, %24 : vector<1x16x1xf32>
      %26 = vector.broadcast %16 : vector<1x1x256xi32> to vector<1x16x256xi32>
      %27 = vector.broadcast %15 : vector<1x16x1xi32> to vector<1x16x256xi32>
      %28 = arith.cmpi eq, %26, %27 : vector<1x16x256xi32>
      %cst_10 = arith.constant 0.899999976 : f32
      %cst_11 = arith.constant 3.92156857E-4 : f32
      %29 = vector.broadcast %cst_10 : f32 to vector<1x16x256xf32>
      %30 = vector.broadcast %cst_11 : f32 to vector<1x16x256xf32>
      %31 = arith.select %28, %29, %30 : vector<1x16x256xi1>, vector<1x16x256xf32>
      %32 = arith.mulf %31, %10 : vector<1x16x256xf32>
      %cst_12 = arith.constant dense<0.000000e+00> : vector<1x16xf32>
      %33 = vector.multi_reduction <add>, %32, %cst_12 [2] : vector<1x16x256xf32> to vector<1x16xf32>
      %34 = vector.shape_cast %33 : vector<1x16xf32> to vector<1x16x1xf32>
      %cst_13 = arith.constant -0.879209339 : f32
      %35 = vector.broadcast %cst_13 : f32 to vector<1x16x1xf32>
      %36 = arith.addf %35, %25 : vector<1x16x1xf32>
      %37 = arith.subf %36, %34 : vector<1x16x1xf32>
      %cst_14 = arith.constant 0.000000e+00 : f32
      %38 = vector.broadcast %cst_14 : f32 to vector<1x16x1xf32>
      %39 = arith.select %13, %38, %37 : vector<1x16x1xi1>, vector<1x16x1xf32>
      %c0_15 = arith.constant 0 : index
      %c0_16 = arith.constant 0 : index
      %c0_17 = arith.constant 0 : index
      %40 = vector.load %arg6[%c0_15, %c0_16, %c0_17] : memref<1x1x1xf32, #tpu.memory_space<vmem>>, vector<1x1x1xf32>
      %41 = vector.shape_cast %39 : vector<1x16x1xf32> to vector<1x1x16x1xf32>
      %cst_18 = arith.constant dense<0.000000e+00> : vector<1xf32>
      %42 = vector.multi_reduction <add>, %41, %cst_18 [1, 2, 3] : vector<1x1x16x1xf32> to vector<1xf32>
      %43 = vector.shape_cast %42 : vector<1xf32> to vector<1x1x1x1xf32>
      %44 = vector.extract %43[0, 0, 0, 0] : f32 from vector<1x1x1x1xf32>
      %45 = vector.broadcast %44 : f32 to vector<1x1x1xf32>
      %46 = arith.addf %40, %45 : vector<1x1x1xf32>
      %c0_19 = arith.constant 0 : index
      %c0_20 = arith.constant 0 : index
      %c0_21 = arith.constant 0 : index
      %47 = vector.load %arg6[%c0_19, %c0_20, %c0_21] : memref<1x1x1xf32, #tpu.memory_space<vmem>>, vector<1x1x1xf32>
      tpu.vector_store %arg6[%c0_19, %c0_20, %c0_21], %46 {strides = array<i32>} : memref<1x1x1xf32, #tpu.memory_space<vmem>>, vector<1x1x1xf32>,
    } else {
    }
    return
  }
  func.func @transform_0(%arg0: i32, %arg1: i32, %arg2: i32, %arg3: memref<4xi32, #tpu.memory_space<smem>>) -> (i32, i32, i32) {
    %0 = arith.index_cast %arg0 : i32 to index
    %1 = memref.load %arg3[%0] : memref<4xi32, #tpu.memory_space<smem>>
    %c1_i32 = arith.constant 1 : i32
    %2 = arith.subi %1, %c1_i32 : i32
    %c0_i32 = arith.constant 0 : i32
    %3 = arith.maxsi %2, %c0_i32 : i32
    %c1_i32_0 = arith.constant 1 : i32
    %4 = arith.muli %arg1, %c1_i32_0 : i32
    %5 = arith.addi %4, %arg2 : i32
    %6 = arith.minsi %5, %3 : i32
    %c0_i32_1 = arith.constant 0 : i32
    %c0_i32_2 = arith.constant 0 : i32
    return %arg0, %6, %c0_i32_1 : i32, i32, i32
  }
  func.func @transform_1(%arg0: i32, %arg1: i32, %arg2: i32, %arg3: memref<4xi32, #tpu.memory_space<smem>>) -> (i32, i32, i32) {
    %0 = arith.index_cast %arg0 : i32 to index
    %1 = memref.load %arg3[%0] : memref<4xi32, #tpu.memory_space<smem>>
    %c1_i32 = arith.constant 1 : i32
    %2 = arith.subi %1, %c1_i32 : i32
    %c0_i32 = arith.constant 0 : i32
    %3 = arith.maxsi %2, %c0_i32 : i32
    %c1_i32_0 = arith.constant 1 : i32
    %4 = arith.muli %arg1, %c1_i32_0 : i32
    %5 = arith.addi %4, %arg2 : i32
    %6 = arith.minsi %5, %3 : i32
    %c0_i32_1 = arith.constant 0 : i32
    %c0_i32_2 = arith.constant 0 : i32
    return %arg0, %6, %c0_i32_1 : i32, i32, i32
  }
  func.func @transform_2(%arg0: i32, %arg1: i32, %arg2: i32, %arg3: memref<4xi32, #tpu.memory_space<smem>>) -> (i32, i32, i32) {
    %c0_i32 = arith.constant 0 : i32
    %c0_i32_0 = arith.constant 0 : i32
    return %arg0, %arg1, %c0_i32 : i32, i32, i32
  }
}

</mosaic_0001>

<llo_original>
// kernel: tpu_custom_call.1
$region0: #{tpu_custom_call.1}
  #allocation0 [shape = 'u32[]', space=smem, size = 0x4, offset = 0x4, fixed_abs, tag = 'smem constant byte address 0x4 - core index']
  #allocation1 [shape = 'u32[144,128]{1,0:T(1,128)}', space=vmem, size = 0x12000, scoped, tag = 'internal scratch']
  #allocation2 [shape = 's32[1]{0}', space=sflag, size = 0x4, scoped, tag = 'scoped memory for tpu_custom_call.1']
  #allocation3 [shape = 'u8[512]{0}', space=smem, size = 0x200, scoped, tag = 'prefetched SMEM operand 0']
  %s0 = inlined_call_operand.vmem [shape: s32[4], index: 0, kind: input, shape index: {}]
  %s1 = inlined_call_operand.hbm [shape: f32[4,16,256], index: 1, kind: input, shape index: {}]
  %s2 = inlined_call_operand.vmem [shape: s32[4,16,1], index: 2, kind: input, shape index: {}]
  %s3 = inlined_call_operand.vmem [shape: f32[4,1,1], index: 3, kind: output, shape index: {}]
  %s4 = sld [smem:[#allocation0]]
  $region53: #{tpu_custom_call.1} parent=0
    _
  %s6 = ssub.s32 1, %s4
  %s7 = scalar_select 0, %s6, %s4
  %s8 = sshll.u32 %s0, 4
  %s9 = int_to_ptr.vmem [resolvable:$true] %s8
  %11 = dma.vmem_to_smem %s9, 16, [#allocation3], [#allocation2]
  %12 = dma.done [#allocation2], 16
  %13 = sfence
  $region1: #{tpu_custom_call.1} parent=0
    #allocation4 [shape = 'u8[32768]{0}', space=vmem, size = 0x8000, scoped, tag = 'input window, operand 1']
    #allocation5 [shape = 's32[2]{0}', space=sflag, size = 0x8, scoped, tag = 'scoped memory for tpu_custom_call.1']
    %14 = vsyncpa [#allocation5], 0
    %s15 = scalar_lea.sflag [#allocation5], 1
    %16 = vsyncpa %s15, 0
    loop: start=0, step=1, limit=6
    $region2: #{tpu_custom_call.1} parent=1 // loop_pre_header
      _
    $region3: #{tpu_custom_call.1} parent=1 // loop_header
      %s18 = sphi 0, %s22
      %p19 = scmp.ge.s32.totalorder %s18, 6
      %s25 = sphi 0, %s44
      %s26 = sphi 0, %s40
      %s27 = sphi 0, %s36
      %s28 = sphi 0, %s25
      %s29 = sphi 0, %s26
      %s30 = sphi 0, %s27
      %s31 = sphi 0, %s28
      %s32 = sphi 0, %s29
      %s33 = sphi 0, %s30
      %s63 = sphi 0, %s65
      %s66 = sphi 0, %s63
      %s67 = sphi 0, %s66
      %s83 = sphi 0, %s67
      %s105 = sphi 0, %s107
      %s108 = sphi 0, %s105
      %s109 = sphi 0, %s108
      %s125 = sphi 0, %s109
      %s133 = sphi 0, %s135
      %s136 = sphi 0, %s133
      %s137 = sphi 0, %s136
      %s153 = sphi 0, %s137
    $region4: #{tpu_custom_call.1} parent=1 // loop_header_branch
      %21 = sbr.rel (%p19) target = $region8
    $region5: #{tpu_custom_call.1} parent=1 // loop_body
      %s23 = ssub.s32 %s18, 1
      %s24 = ssub.s32 %s18, 2
      %s34 = sadd.s32 1, %s27
      %p35 = scmp.ge.s32.totalorder %s34, 1
      %s36 = scalar_select %p35, 0, %s34
      %s37 = sadd.s32 1, %s26
      %s38 = scalar_select %p35, %s37, %s26
      %p39 = scmp.ge.s32.totalorder %s38, 1
      %s40 = scalar_select %p39, 0, %s38
      %s41 = sadd.s32 1, %s25
      %s42 = scalar_select %p39, %s41, %s25
      %p43 = scmp.ge.s32.totalorder %s42, 4
      %s44 = scalar_select %p43, 0, %s42
      %s45 = sld [smem:[#allocation3 + %s25]]
      %s46 = ssub.s32 %s45, 1
      %p47 = scmp.gt.s32.totalorder %s46, 0
      %s48 = scalar_select %p47, %s46, 0
      %s49 = sadd.s32 %s26, %s27
      %p50 = scmp.lt.s32.totalorder %s49, %s48
      %s51 = scalar_select %p50, %s49, %s48
      %s52 = sld [smem:[#allocation3 + %s44]]
      %s53 = ssub.s32 %s52, 1
      %p54 = scmp.gt.s32.totalorder %s53, 0
      %s55 = scalar_select %p54, %s53, 0
      %s56 = sadd.s32 %s40, %s36
      %p57 = scmp.lt.s32.totalorder %s56, %s55
      %s58 = scalar_select %p57, %s56, %s55
      %s59 = ssub.s32 %s25, %s44
      %s60 = ssub.s32 %s51, %s58
      %s61 = sor.u32 %s59, %s60
      %p62 = scmp.eq.s32.totalorder %s61, 0
      %s64 = sadd.s32 %s63, 1
      %s65 = scalar_select %p62, %s63, %s64
      %p68 = pneg %p62
      %p69 = scmp.eq.s32.totalorder %s18, 3
      %p70 = por %p68, %p69
      %p71 = scmp.ne.s32.totalorder %s63, %s66
      %p72 = scmp.eq.s32.totalorder %s18, 0
      %p73 = por %p71, %p72
      %p74 = scmp.ne.s32.totalorder %s63, %s66
      %p75 = scmp.eq.s32.totalorder %s23, 3
      %p76 = por %p74, %p75
      %p77 = scmp.ne.s32.totalorder %s66, %s67
      %p78 = scmp.eq.s32.totalorder %s23, 0
      %p79 = por %p77, %p78
      %p80 = scmp.ne.s32.totalorder %s66, %s67
      %p81 = scmp.eq.s32.totalorder %s24, 3
      %p82 = por %p80, %p81
      %p84 = scmp.ne.s32.totalorder %s67, %s83
      %p85 = scmp.eq.s32.totalorder %s24, 0
      %p86 = por %p84, %p85
      %s87 = sld [smem:[#allocation3 + %s25]]
      %s88 = ssub.s32 %s87, 1
      %p89 = scmp.gt.s32.totalorder %s88, 0
      %s90 = scalar_select %p89, %s88, 0
      %s91 = sadd.s32 %s26, %s27
      %p92 = scmp.lt.s32.totalorder %s91, %s90
      %s93 = scalar_select %p92, %s91, %s90
      %s94 = sld [smem:[#allocation3 + %s44]]
      %s95 = ssub.s32 %s94, 1
      %p96 = scmp.gt.s32.totalorder %s95, 0
      %s97 = scalar_select %p96, %s95, 0
      %s98 = sadd.s32 %s40, %s36
      %p99 = scmp.lt.s32.totalorder %s98, %s97
      %s100 = scalar_select %p99, %s98, %s97
      %s101 = ssub.s32 %s25, %s44
      %s102 = ssub.s32 %s93, %s100
      %s103 = sor.u32 %s101, %s102
      %p104 = scmp.eq.s32.totalorder %s103, 0
      %s106 = sadd.s32 %s105, 1
      %s107 = scalar_select %p104, %s105, %s106
      %p110 = pneg %p104
      %p111 = scmp.eq.s32.totalorder %s18, 3
      %p112 = por %p110, %p111
      %p113 = scmp.ne.s32.totalorder %s105, %s108
      %p114 = scmp.eq.s32.totalorder %s18, 0
      %p115 = por %p113, %p114
      %p116 = scmp.ne.s32.totalorder %s105, %s108
      %p117 = scmp.eq.s32.totalorder %s23, 3
      %p118 = por %p116, %p117
      %p119 = scmp.ne.s32.totalorder %s108, %s109
      %p120 = scmp.eq.s32.totalorder %s23, 0
      %p121 = por %p119, %p120
      %p122 = scmp.ne.s32.totalorder %s108, %s109
      %p123 = scmp.eq.s32.totalorder %s24, 3
      %p124 = por %p122, %p123
      %p126 = scmp.ne.s32.totalorder %s109, %s125
      %p127 = scmp.eq.s32.totalorder %s24, 0
      %p128 = por %p126, %p127
      %s129 = ssub.s32 %s25, %s44
      %s130 = ssub.s32 %s26, %s40
      %s131 = sor.u32 %s129, %s130
      %p132 = scmp.eq.s32.totalorder %s131, 0
      %s134 = sadd.s32 %s133, 1
      %s135 = scalar_select %p132, %s133, %s134
      %p138 = pneg %p132
      %p139 = scmp.eq.s32.totalorder %s18, 3
      %p140 = por %p138, %p139
      %p141 = scmp.ne.s32.totalorder %s133, %s136
      %p142 = scmp.eq.s32.totalorder %s18, 0
      %p143 = por %p141, %p142
      %p144 = scmp.ne.s32.totalorder %s133, %s136
      %p145 = scmp.eq.s32.totalorder %s23, 3
      %p146 = por %p144, %p145
      %p147 = scmp.ne.s32.totalorder %s136, %s137
      %p148 = scmp.eq.s32.totalorder %s23, 0
      %p149 = por %p147, %p148
      %p150 = scmp.ne.s32.totalorder %s136, %s137
      %p151 = scmp.eq.s32.totalorder %s24, 3
      %p152 = por %p150, %p151
      %p154 = scmp.ne.s32.totalorder %s137, %s153
      %p155 = scmp.eq.s32.totalorder %s24, 0
      %p156 = por %p154, %p155
      %p157 = scmp.le.s32.totalorder 1, %s18
      %p158 = scmp.lt.s32.totalorder %s18, 5
      %p159 = pnand %p157, %p158
      %p160 = pneg %p159
      // Predicated region
      $region9: #{tpu_custom_call.1} parent=5 // pred_check
        _
      $region10: #{tpu_custom_call.1} parent=5 // pred_check_branch
        %162 = sbr.rel (%p159) target = $region12
      $region11: #{tpu_custom_call.1} parent=5 // pred_region
        %s163 = ssub.s32 %s18, 1
      $region12: #{tpu_custom_call.1} parent=5 // pred_fallthru
        _
      %p164 = scmp.lt.s32.totalorder %s18, 4
      // Predicated region
      $region13: #{tpu_custom_call.1} parent=5 // pred_check
        %p165 = pneg %p164
      $region14: #{tpu_custom_call.1} parent=5 // pred_check_branch
        %167 = sbr.rel (%p165) target = $region16
      $region15: #{tpu_custom_call.1} parent=5 // pred_region
        // Predicated region
        $region17: #{tpu_custom_call.1} parent=15 // pred_check
          %p168 = pneg %p73
        $region18: #{tpu_custom_call.1} parent=15 // pred_check_branch
          %170 = sbr.rel (%p168) target = $region20
        $region19: #{tpu_custom_call.1} parent=15 // pred_region
          %s171 = sand.u32 %s63, 1
          %s172 = scalar_lea.sflag [#allocation5], %s171
          %s173 = sand.u32 %s63, 1
          %s174 = smul.addr %s173, 32
          %s175 = scalar_lea.vmem [#allocation4], %s174
          %s176 = sld [smem:[#allocation3 + %s25]]
          %s177 = ssub.s32 %s176, 1
          %p178 = scmp.gt.s32.totalorder %s177, 0
          %s179 = scalar_select %p178, %s177, 0
          %s180 = sadd.s32 %s26, %s27
          %p181 = scmp.lt.s32.totalorder %s180, %s179
          %s182 = scalar_select %p181, %s180, %s179
          %s183 = smul.u32 2, %s182
          %s185 = ssub.s32 512, 512
          %186 = vsyncadd %s172, %s185
          %s187 = smul.addr %s183, 2
          %s188 = smul.addr %s25, 4
          %s189 = sadd.s32 %s187, %s188
          %s190 = smul.addr %s189, 128
          %s191 = scalar_lea.hbm %s1, %s190
          %s192 = sshll.u32 %s175, 4
          %s193 = int_to_ptr.vmem [resolvable:$true] %s192
          %198 = dma.hbm_to_vmem [thread:$0]  %s191, 512, %s193, %s172, 256, 256, 16
        $region20: #{tpu_custom_call.1} parent=15 // pred_fallthru
          _
        // Predicated region
        $region21: #{tpu_custom_call.1} parent=15 // pred_check
          %p199 = pneg %p115
        $region22: #{tpu_custom_call.1} parent=15 // pred_check_branch
          %201 = sbr.rel (%p199) target = $region24
        $region23: #{tpu_custom_call.1} parent=15 // pred_region
          %s202 = sld [smem:[#allocation3 + %s25]]
          %s203 = ssub.s32 %s202, 1
          %p204 = scmp.gt.s32.totalorder %s203, 0
          %s205 = scalar_select %p204, %s203, 0
          %s206 = sadd.s32 %s26, %s27
          %p207 = scmp.lt.s32.totalorder %s206, %s205
          %s208 = scalar_select %p207, %s206, %s205
          %s209 = smul.u32 2, %s208
          %p210 = scmp.lt.s32.totalorder %s25, 3
          %s211 = scalar_select %p210, %s25, 3
          %p212 = scmp.lt.s32.totalorder %s209, 1
          %s213 = scalar_select %p212, %s209, 1
          %s214 = smul.addr %s211, 2
          %s215 = sadd.s32 %s213, %s214
          %s216 = smul.addr %s215, 8
          %s217 = scalar_lea.vmem %s2, %s216
          %s218 = sld [smem:[#allocation3 + %s25]]
          %s219 = ssub.s32 %s218, 1
          %p220 = scmp.gt.s32.totalorder %s219, 0
          %s221 = scalar_select %p220, %s219, 0
          %s222 = sadd.s32 %s26, %s27
          %p223 = scmp.lt.s32.totalorder %s222, %s221
          %s224 = scalar_select %p223, %s222, %s221
          %s225 = smul.u32 2, %s224
        $region24: #{tpu_custom_call.1} parent=15 // pred_fallthru
          _
      $region16: #{tpu_custom_call.1} parent=5 // pred_fallthru
        _
      %p226 = scmp.le.s32.totalorder 1, %s18
      %p227 = scmp.lt.s32.totalorder %s18, 5
      %p228 = pnand %p226, %p227
      %p229 = pneg %p228
      // Predicated region
      $region25: #{tpu_custom_call.1} parent=5 // pred_check
        _
      $region26: #{tpu_custom_call.1} parent=5 // pred_check_branch
        %231 = sbr.rel (%p228) target = $region28
      $region27: #{tpu_custom_call.1} parent=5 // pred_region
        %s232 = ssub.s32 %s18, 1
        %s233 = sand.u32 %s66, 1
        %s234 = scalar_lea.sflag [#allocation5], %s233
        %s235 = sand.u32 %s66, 1
        %s236 = smul.addr %s235, 32
        %s237 = scalar_lea.vmem [#allocation4], %s236
        // Predicated region
        $region29: #{tpu_custom_call.1} parent=27 // pred_check
          %p238 = pneg %p79
        $region30: #{tpu_custom_call.1} parent=27 // pred_check_branch
          %240 = sbr.rel (%p238) target = $region32
        $region31: #{tpu_custom_call.1} parent=27 // pred_region
          %241 = dma.done %s234, 512
        $region32: #{tpu_custom_call.1} parent=27 // pred_fallthru
          _
        %s242 = sand.u32 %s66, 1
        %s243 = scalar_lea.sflag [#allocation5], %s242
        %s244 = sand.u32 %s66, 1
        %s245 = smul.addr %s244, 32
        %s246 = scalar_lea.vmem [#allocation4], %s245
        %p247 = pneg %p79
        %p248 = pneg %p76
        %s249 = sld [smem:[#allocation3 + %s28]]
        %s250 = ssub.s32 %s249, 1
        %p251 = scmp.gt.s32.totalorder %s250, 0
        %s252 = scalar_select %p251, %s250, 0
        %s253 = sadd.s32 %s29, %s30
        %p254 = scmp.lt.s32.totalorder %s253, %s252
        %s255 = scalar_select %p254, %s253, %s252
        %s256 = smul.u32 2, %s255
        %p257 = scmp.lt.s32.totalorder %s28, 3
        %s258 = scalar_select %p257, %s28, 3
        %p259 = scmp.lt.s32.totalorder %s256, 1
        %s260 = scalar_select %p259, %s256, 1
        %s261 = smul.addr %s258, 2
        %s262 = sadd.s32 %s260, %s261
        %s263 = smul.addr %s262, 8
        %s264 = scalar_lea.vmem %s2, %s263
        %p265 = pneg %p121
        %p266 = pneg %p118
        %p267 = pneg %p149
        %p268 = pneg %p146
        %p269 = scmp.lt.s32.totalorder %s28, 3
        %s270 = scalar_select %p269, %s28, 3
        %p271 = scmp.lt.s32.totalorder %s29, 0
        %s272 = scalar_select %p271, %s29, 0
        %s273 = sadd.s32 %s272, %s270
        %s274 = scalar_lea.vmem %s3, %s273
        %s275 = sld [smem:[#allocation3 + %s28]]
        %s276 = ssub.s32 %s275, 1
        %p277 = scmp.gt.s32.totalorder %s276, 0
        %s278 = scalar_select %p277, %s276, 0
        %s279 = sadd.s32 %s29, %s30
        %p280 = scmp.lt.s32.totalorder %s279, %s278
        %s281 = scalar_select %p280, %s279, %s278
        %s282 = smul.u32 2, %s281
        %s283 = sld [smem:[#allocation3 + %s28]]
        %s284 = ssub.s32 %s283, 1
        %p285 = scmp.gt.s32.totalorder %s284, 0
        %s286 = scalar_select %p285, %s284, 0
        %s287 = sadd.s32 %s29, %s30
        %p288 = scmp.lt.s32.totalorder %s287, %s286
        %s289 = scalar_select %p288, %s287, %s286
        %s290 = smul.u32 2, %s289
        %p291 = scmp.lt.s32.totalorder %s28, 3
        %s292 = scalar_select %p291, %s28, 3
        %p293 = scmp.lt.s32.totalorder %s290, 1
        %s294 = scalar_select %p293, %s290, 1
        %s295 = smul.addr %s292, 2
        %s296 = sadd.s32 %s294, %s295
        %s297 = smul.addr %s296, 8
        %s298 = scalar_lea.vmem %s2, %s297
        %s299 = sld [smem:[#allocation3 + %s28]]
        %s300 = ssub.s32 %s299, 1
        %p301 = scmp.gt.s32.totalorder %s300, 0
        %s302 = scalar_select %p301, %s300, 0
        %s303 = sadd.s32 %s29, %s30
        %p304 = scmp.lt.s32.totalorder %s303, %s302
        %s305 = scalar_select %p304, %s303, %s302
        %s306 = smul.u32 2, %s305
        %p307 = scmp.lt.s32.totalorder %s28, 3
        %s308 = scalar_select %p307, %s28, 3
        %p309 = scmp.lt.s32.totalorder %s29, 0
        %s310 = scalar_select %p309, %s29, 0
        %s311 = sadd.s32 %s310, %s308
        %s312 = scalar_lea.vmem %s3, %s311
        %p313 = scmp.eq.s32.totalorder %s30, 0
        // Predicated region
        $region33: #{tpu_custom_call.1} parent=27 // pred_check
          %p314 = pneg %p313
        $region34: #{tpu_custom_call.1} parent=27 // pred_check_branch
          %316 = sbr.rel (%p314) target = $region36
        $region35: #{tpu_custom_call.1} parent=27 // pred_region
          %vm317 = vcmask 0
          %318 = vst.msk [vmem:[%s312] sm:$0x1] %vm317, 0.0
        $region36: #{tpu_custom_call.1} parent=27 // pred_fallthru
          _
        %s319 = sadd.s32 %s29, %s30
        %s320 = sld [smem:[#allocation3 + %s28]]
        %p321 = scmp.lt.s32.totalorder %s319, %s320
        // Predicated region
        $region37: #{tpu_custom_call.1} parent=27 // pred_check
          %p322 = pneg %p321
        $region38: #{tpu_custom_call.1} parent=27 // pred_check_branch
          %324 = sbr.rel (%p322) target = $region40
        $region39: #{tpu_custom_call.1} parent=27 // pred_region
          %v325 = vld [vmem:[%s237] sm:$0xff]
          %v326 = vld [vmem:[%s237 + $0x8] sm:$0xff]
          %v327 = vld [vmem:[%s237 + $0x10] sm:$0xff]
          %v328 = vld [vmem:[%s237 + $0x18] sm:$0xff]
          %v329 = vld [vmem:[%s298] sm:$0xff]
          %v330 = vld [vmem:[%s298 + $0x8] sm:$0xff]
          %vm331 = vcmp.eq.s32.totalorder %v329, 0
          %vm332 = vcmp.eq.s32.totalorder %v330, 0
          %v333 = vlaneseq
          %v334 = vand.u32 %v333, 127
          %v335 = vadd.s32 %v334, 128
          %v336 = vmax.f32 %v325, %v326
          %337 = vmax.xlane.f32.xlu0 %v336
          %v338 = vpop.xlane.xlu0 %337
          %v339 = vmax.f32 %v327, %v328
          %340 = vmax.xlane.f32.xlu0 %v339
          %v341 = vpop.xlane.xlu0 %340
          %v342 = vsub.f32 %v325, %v338
          %v343 = vsub.f32 %v326, %v338
          %v344 = vsub.f32 %v327, %v341
          %v345 = vsub.f32 %v328, %v341
          %v346 = vmul.f32 %v342, 1.442695
          %v347 = vpow.pop %v346
          %v348 = vmul.f32 %v343, 1.442695
          %v349 = vpow.pop %v348
          %v350 = vmul.f32 %v344, 1.442695
          %v351 = vpow.pop %v350
          %v352 = vmul.f32 %v345, 1.442695
          %v353 = vpow.pop %v352
          %v354 = vadd.f32 %v347, %v349
          %355 = vadd.xlane.f32.xlu0 %v354
          %v356 = vpop.xlane.xlu0 %355
          %v357 = vadd.f32 %v351, %v353
          %358 = vadd.xlane.f32.xlu0 %v357
          %v359 = vpop.xlane.xlu0 %358
          %v360 = vlog2.pop %v356
          %v361 = vmul.f32 %v360, 0.6931472
          %v362 = vlog2.pop %v359
          %v363 = vmul.f32 %v362, 0.6931472
          %v364 = vadd.f32 %v338, %v361
          %v365 = vadd.f32 %v341, %v363
          %366 = vset.pattern.permute.xlu0 0
          %367 = vperm.xlu0 %366, %v329
          %v368 = vpop.permute.xlu0 %367
          %369 = vset.pattern.permute.xlu0 0
          %370 = vperm.xlu0 %369, %v330
          %v371 = vpop.permute.xlu0 %370
          %vm372 = vcmp.eq.s32.totalorder %v334, %v368
          %vm373 = vcmp.eq.s32.totalorder %v335, %v368
          %vm374 = vcmp.eq.s32.totalorder %v334, %v371
          %vm375 = vcmp.eq.s32.totalorder %v335, %v371
          %v376 = vsel %vm372, 0.9, 0.00039215686
          %v377 = vsel %vm373, 0.9, 0.00039215686
          %v378 = vsel %vm374, 0.9, 0.00039215686
          %v379 = vsel %vm375, 0.9, 0.00039215686
          %v380 = vmul.f32 %v376, %v325
          %v381 = vmul.f32 %v377, %v326
          %v382 = vmul.f32 %v378, %v327
          %v383 = vmul.f32 %v379, %v328
          %v384 = vadd.f32 %v380, %v381
          %385 = vadd.xlane.f32.xlu0 %v384
          %v386 = vpop.xlane.xlu0 %385
          %v387 = vadd.f32 %v382, %v383
          %388 = vadd.xlane.f32.xlu0 %v387
          %v389 = vpop.xlane.xlu0 %388
          %v390 = vadd.f32 %v364, -0.87920934
          %v391 = vadd.f32 %v365, -0.87920934
          %v392 = vsub.f32 %v390, %v386
          %v393 = vsub.f32 %v391, %v389
          %v394 = vsel %vm331, 0.0, %v392
          %v395 = vsel %vm332, 0.0, %v393
          %v396 = vld [vmem:[%s312] sm:$0x1]
          %vm397 = vcmask 7168
          %v398 = vsel %vm397, %v394, 0.0
          %v399 = vsel %vm397, %v395, 0.0
          %v400 = vadd.f32 %v398, %v399
          %401 = vadd.xlane.f32.xlu0 %v400
          %v402 = vpop.xlane.xlu0 %401
          %v403 = vrot.slane %v402, 4
          %v404 = vadd.f32 %v402, %v403
          %v405 = vrot.slane %v404, 2
          %v406 = vadd.f32 %v404, %v405
          %v407 = vrot.slane %v406, 1
          %v408 = vadd.f32 %v406, %v407
          %s409 = vtos %v408
          %v410 = vstv %s409
          %v411 = vadd.f32 %v396, %v410
          %vm412 = vcmask 0
          %413 = vst.msk [vmem:[%s312] sm:$0x1] %vm412, %v411
        $region40: #{tpu_custom_call.1} parent=27 // pred_fallthru
          _
        %p414 = scmp.lt.s32.totalorder %s28, 3
        %s415 = scalar_select %p414, %s28, 3
        %p416 = scmp.lt.s32.totalorder %s29, 0
        %s417 = scalar_select %p416, %s29, 0
        %s418 = sadd.s32 %s417, %s415
        %s419 = scalar_lea.vmem %s3, %s418
        // Predicated region
        $region41: #{tpu_custom_call.1} parent=27 // pred_check
          %p420 = pneg %p146
        $region42: #{tpu_custom_call.1} parent=27 // pred_check_branch
          %422 = sbr.rel (%p420) target = $region44
        $region43: #{tpu_custom_call.1} parent=27 // pred_region
          _
        $region44: #{tpu_custom_call.1} parent=27 // pred_fallthru
          _
      $region28: #{tpu_custom_call.1} parent=5 // pred_fallthru
        _
      %p423 = scmp.le.s32.totalorder 2, %s18
      // Predicated region
      $region45: #{tpu_custom_call.1} parent=5 // pred_check
        %p424 = pneg %p423
      $region46: #{tpu_custom_call.1} parent=5 // pred_check_branch
        %426 = sbr.rel (%p424) target = $region48
      $region47: #{tpu_custom_call.1} parent=5 // pred_region
        %s427 = ssub.s32 %s18, 2
        // Predicated region
        $region49: #{tpu_custom_call.1} parent=47 // pred_check
          %p428 = pneg %p152
        $region50: #{tpu_custom_call.1} parent=47 // pred_check_branch
          %430 = sbr.rel (%p428) target = $region52
        $region51: #{tpu_custom_call.1} parent=47 // pred_region
          %p431 = scmp.lt.s32.totalorder %s31, 3
          %s432 = scalar_select %p431, %s31, 3
          %p433 = scmp.lt.s32.totalorder %s32, 0
          %s434 = scalar_select %p433, %s32, 0
          %s435 = sadd.s32 %s434, %s432
          %s436 = scalar_lea.vmem %s3, %s435
        $region52: #{tpu_custom_call.1} parent=47 // pred_fallthru
          _
      $region48: #{tpu_custom_call.1} parent=5 // pred_fallthru
        _
    $region6: #{tpu_custom_call.1} parent=1 // loop_footer
      %s22 = sadd.s32 1, %s18
    $region7: #{tpu_custom_call.1} parent=1 // loop_footer_branch
      %17 = sbr.rel target = $region3
    $region8: #{tpu_custom_call.1} parent=1 // loop_exit
      _
    %437 = vsyncpa [#allocation5], 1
    %s438 = scalar_lea.sflag [#allocation5], 1
    %439 = vsyncpa %s438, 1

</llo_original>
